<compile_context>
chip_gen: v7x
topology: tpu7x:2x2x1
jax: 0.10.0
libtpu: 0.0.40
codegen_flags: <defaults>
</compile_context>

<pallas_src>
import jax
import jax.numpy as jnp
from jax.experimental import pallas as pl
from jax.experimental.pallas import tpu as pltpu


def _discriminator_kernel(x_ref, w1_ref, b1_ref, w2_ref, b2_ref, o_ref):
    # x_ref : (tb, D)       batch tile (f32 or bf16 as stored in HBM)
    # w1_ref: (D, H)        hidden Linear weight, pre-transposed, f32 (resident)
    # b1_ref: (1, H)        hidden bias, f32 (resident)
    # w2_ref: (1, H)        logit weight as a lane-dense row, f32 (resident)
    # b2_ref: (1, 1) SMEM   logit bias (f32 scalar)
    # o_ref : (tb, 1)       sigmoid(logits)

    x = x_ref[...]
    if x.dtype != jnp.float32:
        x = x.astype(jnp.float32)  # in-kernel cast rides the VPU; MXU keeps f32 accumulate

    # Hidden layer: MXU matmul with f32 accumulation, bias, LeakyReLU(0.2) on the VPU.
    h = jnp.dot(x, w1_ref[...], preferred_element_type=jnp.float32)
    h = h + b1_ref[...]
    h = jnp.where(h >= 0.0, h, 0.2 * h)

    # Logit layer as VPU multiply + cross-lane (XLU) reduction: (tb,H)*(1,H) -> (tb,1).
    logits = jnp.sum(h * w2_ref[...], axis=-1, keepdims=True) + b2_ref[0, 0]

    o_ref[...] = jax.nn.sigmoid(logits)


def _round_up(n, m):
    return ((n + m - 1) // m) * m


def _choose_tile(b_rows, tb_max):
    # Largest tile <= tb_max that still yields >= 2 grid tiles when the batch allows it
    # (keeps both v7x TensorCores fed via the "parallel" batch axis).
    target = _round_up(pl.cdiv(b_rows, 2), 8)
    return max(8, min(tb_max, target))


def discriminator_forward(x, w1, b1, w2, b2, *, tb=2048):
    """x: (B, D) float32 or bfloat16.  Returns (B,) float32, matching the PyTorch module."""
    assert tb >= 8 and tb % 8 == 0, "batch tile must be a multiple of 8 sublanes"
    B_in, D = x.shape
    H = w1.shape[-1]

    # Rare tiny-batch case: pad up to one 8-row sublane group (a few rows only).
    B = B_in
    if B < 8:
        x = jnp.pad(x, ((0, 8 - B), (0, 0)))
        B = 8

    tb_eff = _choose_tile(B, tb)
    num_tiles = pl.cdiv(B, tb_eff)          # ragged last block handled by Pallas masking

    # Weights stay f32 (resident, DMA'd once); x is streamed in its stored dtype.
    w1 = w1.astype(jnp.float32)
    b1 = b1.reshape(1, H).astype(jnp.float32)
    w2_row = w2.reshape(1, H).astype(jnp.float32)   # lane-dense logit weight row
    b2 = b2.reshape(1, 1).astype(jnp.float32)

    # VMEM budget: double-buffered x tile + double-buffered output + resident weights
    # + headroom for the (tb, H) f32 intermediate.  Cap at v7x's 64 MiB physical VMEM.
    x_item = jnp.dtype(x.dtype).itemsize
    vmem_est = (2 * tb_eff * D * x_item          # x double-buffer
                + 2 * tb_eff * 4                 # output double-buffer
                + D * H * 4 + 4 * H * 2          # resident W1, b1, w2
                + 2 * tb_eff * H * 4)            # hidden intermediate headroom
    vmem_limit = int(min(max(vmem_est + (8 << 20), 32 << 20), 64 << 20))

    out = pl.pallas_call(
        _discriminator_kernel,
        out_shape=jax.ShapeDtypeStruct((B, 1), jnp.float32),
        grid=(num_tiles,),
        in_specs=[
            pl.BlockSpec((tb_eff, D), lambda i: (i, 0)),              # x batch tile (streamed)
            pl.BlockSpec((D, H), lambda i: (0, 0)),                   # W1 (resident)
            pl.BlockSpec((1, H), lambda i: (0, 0)),                   # b1 (resident)
            pl.BlockSpec((1, H), lambda i: (0, 0)),                   # w2 row (resident)
            pl.BlockSpec(memory_space=pltpu.MemorySpace.SMEM),        # b2 scalar
        ],
        out_specs=pl.BlockSpec((tb_eff, 1), lambda i: (i, 0)),
        compiler_params=pltpu.CompilerParams(
            dimension_semantics=("parallel",),
            vmem_limit_bytes=vmem_limit,
        ),
    )(x, w1, b1, w2_row, b2)

    # matches: output.view(-1, 1).squeeze(1)
    return out.reshape(-1)[:B_in]


def init_params(key, input_size, hidden_size):
    """Deterministic init mirroring nn.Linear's U(-1/sqrt(fan_in), 1/sqrt(fan_in))."""
    k1, k2, k3, k4 = jax.random.split(key, 4)
    lim1 = 1.0 / (input_size ** 0.5)
    lim2 = 1.0 / (hidden_size ** 0.5)
    # W1 stored as [in, out] (transposed vs PyTorch's [out, in]); w2 as a (1, H) row.
    w1 = jax.random.uniform(k1, (input_size, hidden_size), jnp.float32, -lim1, lim1)
    b1 = jax.random.uniform(k2, (1, hidden_size), jnp.float32, -lim1, lim1)
    w2 = jax.random.uniform(k3, (1, hidden_size), jnp.float32, -lim2, lim2)
    b2 = jax.random.uniform(k4, (1, 1), jnp.float32, -lim2, lim2)
    return w1, b1, w2, b2


def reference_forward(x, w1, b1, w2, b2):
    x = x.astype(jnp.float32)
    h = x @ w1 + b1.reshape(1, -1)
    h = jnp.where(h >= 0.0, h, 0.2 * h)
    logits = h @ w2.reshape(-1, 1) + b2.reshape(1, 1)
    return jax.nn.sigmoid(logits).reshape(-1, 1).squeeze(1)


if __name__ == "__main__":
    # Small shapes consistent with the module (input_size=D, hidden_sizes=[H]).
    D, H = 256, 128

    key = jax.random.PRNGKey(0)
    kx, kp = jax.random.split(key)
    w1, b1, w2, b2 = init_params(kp, D, H)

    # Case 1: B=12 — non-multiple of 8, 2 grid tiles with a ragged trailing block (no pad).
    x1 = jax.random.normal(kx, (12, D), jnp.float32)
    out1 = jax.block_until_ready(discriminator_forward(x1, w1, b1, w2, b2))
    ref1 = reference_forward(x1, w1, b1, w2, b2)
    assert out1.shape == (12,)
    assert jnp.allclose(out1, ref1, atol=1e-5, rtol=1e-5), "f32 mismatch (case 1)"

    # Case 2: B=4 — the rare B<8 path (tiny pad to one sublane group).
    x2 = jax.random.normal(jax.random.fold_in(kx, 1), (4, D), jnp.float32)
    out2 = jax.block_until_ready(discriminator_forward(x2, w1, b1, w2, b2))
    ref2 = reference_forward(x2, w1, b1, w2, b2)
    assert out2.shape == (4,)
    assert jnp.allclose(out2, ref2, atol=1e-5, rtol=1e-5), "f32 mismatch (case 2)"

    # Case 3: B=20 with an explicit small tile cap — multi-tile grid + ragged last block.
    x3 = jax.random.normal(jax.random.fold_in(kx, 2), (20, D), jnp.float32)
    out3 = jax.block_until_ready(discriminator_forward(x3, w1, b1, w2, b2, tb=8))
    ref3 = reference_forward(x3, w1, b1, w2, b2)
    assert out3.shape == (20,)
    assert jnp.allclose(out3, ref3, atol=1e-5, rtol=1e-5), "f32 mismatch (case 3)"

    # Case 4: x stored as bf16 "at the producer" — kernel streams bf16, weights stay f32.
    x4 = x1.astype(jnp.bfloat16)
    out4 = jax.block_until_ready(discriminator_forward(x4, w1, b1, w2, b2))
    ref4 = reference_forward(x4, w1, b1, w2, b2)   # reference on the same bf16-rounded x
    assert out4.shape == (12,)
    assert jnp.allclose(out4, ref4, atol=1e-3, rtol=1e-3), "bf16 mismatch (case 4)"

    print("KERNEL_OK")
</pallas_src>

<mosaic_0001>
module attributes {stable_mosaic.version = 11 : i64} {
  func.func @_discriminator_kernel(%arg0: i32, %arg1: memref<8x256xf32, #tpu.memory_space<vmem>>, %arg2: memref<256x128xf32, #tpu.memory_space<vmem>>, %arg3: memref<1x128xf32, #tpu.memory_space<vmem>>, %arg4: memref<1x128xf32, #tpu.memory_space<vmem>>, %arg5: memref<1x1xf32, #tpu.memory_space<smem>>, %arg6: memref<8x1xf32, #tpu.memory_space<vmem>>) attributes {dimension_semantics = [#tpu.dimension_semantics<parallel>], iteration_bounds = array<i64: 2>, scalar_prefetch = 0 : i64, scratch_operands = 0 : i64, tpu.core_type = #tpu.core_type<tc>, window_params = [{transform_indices = @transform_0, window_bounds = array<i64: 8, 256>}, {pipeline_mode = #tpu.pipeline_mode<synchronous>, transform_indices = @transform_1, window_bounds = array<i64: 256, 128>}, {pipeline_mode = #tpu.pipeline_mode<synchronous>, transform_indices = @transform_2, window_bounds = array<i64: 1, 128>}, {pipeline_mode = #tpu.pipeline_mode<synchronous>, transform_indices = @transform_3, window_bounds = array<i64: 1, 128>}, {transform_indices = @transform_4, window_bounds = array<i64: 1, 1>}, {transform_indices = @transform_5, window_bounds = array<i64: 8, 1>}]} {
    %c0 = arith.constant 0 : index
    %c0_0 = arith.constant 0 : index
    %0 = vector.load %arg1[%c0, %c0_0] : memref<8x256xf32, #tpu.memory_space<vmem>>, vector<8x256xf32>
    %c0_1 = arith.constant 0 : index
    %c0_2 = arith.constant 0 : index
    %1 = vector.load %arg2[%c0_1, %c0_2] : memref<256x128xf32, #tpu.memory_space<vmem>>, vector<256x128xf32>
    %cst = arith.constant dense<0.000000e+00> : vector<8x128xf32>
    %2 = tpu.matmul %0, %1, %cst {dimension_numbers = #tpu.dot_dimension_numbers<[1], [0], [0], [1], [0, 0, 1, 1], [], []>} : vector<8x256xf32>, vector<256x128xf32>, vector<8x128xf32> -> vector<8x128xf32>
    %c0_3 = arith.constant 0 : index
    %c0_4 = arith.constant 0 : index
    %3 = vector.load %arg3[%c0_3, %c0_4] : memref<1x128xf32, #tpu.memory_space<vmem>>, vector<1x128xf32>
    %4 = vector.broadcast %3 : vector<1x128xf32> to vector<8x128xf32>
    %5 = arith.addf %2, %4 : vector<8x128xf32>
    %cst_5 = arith.constant 0.000000e+00 : f32
    %6 = vector.broadcast %cst_5 : f32 to vector<8x128xf32>
    %7 = arith.cmpf oge, %5, %6 : vector<8x128xf32>
    %cst_6 = arith.constant 2.000000e-01 : f32
    %8 = vector.broadcast %cst_6 : f32 to vector<8x128xf32>
    %9 = arith.mulf %8, %5 : vector<8x128xf32>
    %10 = arith.select %7, %5, %9 : vector<8x128xi1>, vector<8x128xf32>
    %c0_7 = arith.constant 0 : index
    %c0_8 = arith.constant 0 : index
    %11 = vector.load %arg4[%c0_7, %c0_8] : memref<1x128xf32, #tpu.memory_space<vmem>>, vector<1x128xf32>
    %12 = vector.broadcast %11 : vector<1x128xf32> to vector<8x128xf32>
    %13 = arith.mulf %10, %12 : vector<8x128xf32>
    %cst_9 = arith.constant dense<0.000000e+00> : vector<8xf32>
    %14 = vector.multi_reduction <add>, %13, %cst_9 [1] : vector<8x128xf32> to vector<8xf32>
    %15 = vector.shape_cast %14 : vector<8xf32> to vector<8x1xf32>
    %c0_10 = arith.constant 0 : index
    %c0_11 = arith.constant 0 : index
    %16 = memref.load %arg5[%c0_10, %c0_11] : memref<1x1xf32, #tpu.memory_space<smem>>
    %17 = vector.broadcast %16 : f32 to vector<8x1xf32>
    %18 = arith.addf %15, %17 : vector<8x1xf32>
    %19 = arith.negf %18 : vector<8x1xf32>
    %20 = math.exp %19 : vector<8x1xf32>
    %cst_12 = arith.constant 1.000000e+00 : f32
    %21 = vector.broadcast %cst_12 : f32 to vector<8x1xf32>
    %22 = arith.addf %21, %20 : vector<8x1xf32>
    %23 = arith.divf %21, %22 : vector<8x1xf32>
    %c0_13 = arith.constant 0 : index
    %c0_14 = arith.constant 0 : index
    %24 = vector.load %arg6[%c0_13, %c0_14] : memref<8x1xf32, #tpu.memory_space<vmem>>, vector<8x1xf32>
    tpu.vector_store %arg6[%c0_13, %c0_14], %23 {strides = array<i32>} : memref<8x1xf32, #tpu.memory_space<vmem>>, vector<8x1xf32>,
    return
  }
  func.func @transform_0(%arg0: i32) -> (i32, i32) {
    %c0_i32 = arith.constant 0 : i32
    %c0_i32_0 = arith.constant 0 : i32
    return %arg0, %c0_i32 : i32, i32
  }
  func.func @transform_1(%arg0: i32) -> (i32, i32) {
    %c0_i32 = arith.constant 0 : i32
    %c0_i32_0 = arith.constant 0 : i32
    %c0_i32_1 = arith.constant 0 : i32
    return %c0_i32, %c0_i32_0 : i32, i32
  }
  func.func @transform_2(%arg0: i32) -> (i32, i32) {
    %c0_i32 = arith.constant 0 : i32
    %c0_i32_0 = arith.constant 0 : i32
    %c0_i32_1 = arith.constant 0 : i32
    return %c0_i32, %c0_i32_0 : i32, i32
  }
  func.func @transform_3(%arg0: i32) -> (i32, i32) {
    %c0_i32 = arith.constant 0 : i32
    %c0_i32_0 = arith.constant 0 : i32
    %c0_i32_1 = arith.constant 0 : i32
    return %c0_i32, %c0_i32_0 : i32, i32
  }
  func.func @transform_4(%arg0: i32) -> (i32, i32) {
    %c0_i32 = arith.constant 0 : i32
    %c0_i32_0 = arith.constant 0 : i32
    %c0_i32_1 = arith.constant 0 : i32
    return %c0_i32, %c0_i32_0 : i32, i32
  }
  func.func @transform_5(%arg0: i32) -> (i32, i32) {
    %c0_i32 = arith.constant 0 : i32
    %c0_i32_0 = arith.constant 0 : i32
    return %arg0, %c0_i32 : i32, i32
  }
}

</mosaic_0001>

<llo_original>
// kernel: tpu_custom_call.1
$region0: #{tpu_custom_call.1}
  #allocation0 [shape = 'u32[]', space=smem, size = 0x4, offset = 0x4, fixed_abs, tag = 'smem constant byte address 0x4 - core index']
  #allocation1 [shape = 'u32[144,128]{1,0:T(1,128)}', space=vmem, size = 0x12000, scoped, tag = 'internal scratch']
  #allocation2 [shape = 'f32[1,1]{1,0:T(1,128)S(6)}', space=smem, size = 0x200, scoped, tag = 'scoped memory for tpu_custom_call.1']
  %s0 = inlined_call_operand.hbm [shape: f32[12,256], index: 0, kind: input, shape index: {}]
  %s1 = inlined_call_operand.hbm [shape: f32[256,128], index: 1, kind: input, shape index: {}]
  %s2 = inlined_call_operand.vmem [shape: f32[1,128], index: 2, kind: input, shape index: {}]
  %s3 = inlined_call_operand.vmem [shape: f32[1,128], index: 3, kind: input, shape index: {}]
  %s4 = inlined_call_operand.<no memory space> [shape: f32[1,1], index: 4, kind: input, shape index: {}]
  %s5 = inlined_call_operand.vmem [shape: f32[12,1], index: 5, kind: output, shape index: {}]
  %s6 = sld [smem:[#allocation0]]
  $region61: #{tpu_custom_call.1} parent=0
    _
  %s8 = ssub.s32 1, %s6
  %s9 = scalar_select 0, %s8, %s6
  %10 = sst [smem:[#allocation2]] %s4
  $region1: #{tpu_custom_call.1} parent=0
    #allocation3 [shape = 'u8[16384]{0}', space=vmem, size = 0x4000, scoped, tag = 'input window, operand 0']
    #allocation4 [shape = 's32[2]{0}', space=sflag, size = 0x8, scoped, tag = 'scoped memory for tpu_custom_call.1']
    #allocation5 [shape = 'u8[131072]{0}', space=vmem, size = 0x20000, scoped, tag = 'input window, operand 1, single buffered']
    #allocation6 [shape = 's32[1]{0}', space=sflag, size = 0x4, scoped, tag = 'scoped memory for tpu_custom_call.1']
    %11 = vsyncpa [#allocation4], 0
    %s12 = scalar_lea.sflag [#allocation4], 1
    %13 = vsyncpa %s12, 0
    %14 = vsyncpa [#allocation6], 0
    loop: start=0, step=1, limit=4
    $region2: #{tpu_custom_call.1} parent=1 // loop_pre_header
      _
    $region3: #{tpu_custom_call.1} parent=1 // loop_header
      %s16 = sphi 0, %s20
      %p17 = scmp.ge.s32.totalorder %s16, 4
      %s26 = sphi 0, %s28
      %s29 = sphi 0, %s26
      %s30 = sphi 0, %s29
      %s46 = sphi 0, %s30
      %s50 = sphi 0, %s50
      %s52 = sphi 0, %s50
      %s53 = sphi 0, %s52
      %s67 = sphi 0, %s53
      %s71 = sphi 0, %s71
      %s73 = sphi 0, %s71
      %s74 = sphi 0, %s73
      %s88 = sphi 0, %s74
      %s92 = sphi 0, %s92
      %s94 = sphi 0, %s92
      %s95 = sphi 0, %s94
      %s109 = sphi 0, %s95
      %s113 = sphi 0, %s113
      %s115 = sphi 0, %s113
      %s116 = sphi 0, %s115
      %s130 = sphi 0, %s116
      %s136 = sphi 0, %s138
      %s139 = sphi 0, %s136
      %s140 = sphi 0, %s139
      %s156 = sphi 0, %s140
    $region4: #{tpu_custom_call.1} parent=1 // loop_header_branch
      %19 = sbr.rel (%p17) target = $region8
    $region5: #{tpu_custom_call.1} parent=1 // loop_body
      %s21 = ssub.s32 %s16, 1
      %s22 = ssub.s32 %s16, 2
      %s23 = sadd.s32 %s16, 1
      %s24 = ssub.s32 %s16, %s23
      %p25 = scmp.eq.s32.totalorder %s24, 0
      %s27 = sadd.s32 %s26, 1
      %s28 = scalar_select %p25, %s26, %s27
      %p31 = pneg %p25
      %p32 = scmp.eq.s32.totalorder %s16, 1
      %p33 = por %p31, %p32
      %p34 = scmp.ne.s32.totalorder %s26, %s29
      %p35 = scmp.eq.s32.totalorder %s16, 0
      %p36 = por %p34, %p35
      %p37 = scmp.ne.s32.totalorder %s26, %s29
      %p38 = scmp.eq.s32.totalorder %s21, 1
      %p39 = por %p37, %p38
      %p40 = scmp.ne.s32.totalorder %s29, %s30
      %p41 = scmp.eq.s32.totalorder %s21, 0
      %p42 = por %p40, %p41
      %p43 = scmp.ne.s32.totalorder %s29, %s30
      %p44 = scmp.eq.s32.totalorder %s22, 1
      %p45 = por %p43, %p44
      %p47 = scmp.ne.s32.totalorder %s30, %s46
      %p48 = scmp.eq.s32.totalorder %s22, 0
      %p49 = por %p47, %p48
      %s51 = sadd.s32 %s50, 1
      %p54 = scmp.eq.s32.totalorder %s16, 1
      %p55 = scmp.ne.s32.totalorder %s50, %s52
      %p56 = scmp.eq.s32.totalorder %s16, 0
      %p57 = por %p55, %p56
      %p58 = scmp.ne.s32.totalorder %s50, %s52
      %p59 = scmp.eq.s32.totalorder %s21, 1
      %p60 = por %p58, %p59
      %p61 = scmp.ne.s32.totalorder %s52, %s53
      %p62 = scmp.eq.s32.totalorder %s21, 0
      %p63 = por %p61, %p62
      %p64 = scmp.ne.s32.totalorder %s52, %s53
      %p65 = scmp.eq.s32.totalorder %s22, 1
      %p66 = por %p64, %p65
      %p68 = scmp.ne.s32.totalorder %s53, %s67
      %p69 = scmp.eq.s32.totalorder %s22, 0
      %p70 = por %p68, %p69
      %s72 = sadd.s32 %s71, 1
      %p75 = scmp.eq.s32.totalorder %s16, 1
      %p76 = scmp.ne.s32.totalorder %s71, %s73
      %p77 = scmp.eq.s32.totalorder %s16, 0
      %p78 = por %p76, %p77
      %p79 = scmp.ne.s32.totalorder %s71, %s73
      %p80 = scmp.eq.s32.totalorder %s21, 1
      %p81 = por %p79, %p80
      %p82 = scmp.ne.s32.totalorder %s73, %s74
      %p83 = scmp.eq.s32.totalorder %s21, 0
      %p84 = por %p82, %p83
      %p85 = scmp.ne.s32.totalorder %s73, %s74
      %p86 = scmp.eq.s32.totalorder %s22, 1
      %p87 = por %p85, %p86
      %p89 = scmp.ne.s32.totalorder %s74, %s88
      %p90 = scmp.eq.s32.totalorder %s22, 0
      %p91 = por %p89, %p90
      %s93 = sadd.s32 %s92, 1
      %p96 = scmp.eq.s32.totalorder %s16, 1
      %p97 = scmp.ne.s32.totalorder %s92, %s94
      %p98 = scmp.eq.s32.totalorder %s16, 0
      %p99 = por %p97, %p98
      %p100 = scmp.ne.s32.totalorder %s92, %s94
      %p101 = scmp.eq.s32.totalorder %s21, 1
      %p102 = por %p100, %p101
      %p103 = scmp.ne.s32.totalorder %s94, %s95
      %p104 = scmp.eq.s32.totalorder %s21, 0
      %p105 = por %p103, %p104
      %p106 = scmp.ne.s32.totalorder %s94, %s95
      %p107 = scmp.eq.s32.totalorder %s22, 1
      %p108 = por %p106, %p107
      %p110 = scmp.ne.s32.totalorder %s95, %s109
      %p111 = scmp.eq.s32.totalorder %s22, 0
      %p112 = por %p110, %p111
      %s114 = sadd.s32 %s113, 1
      %p117 = scmp.eq.s32.totalorder %s16, 1
      %p118 = scmp.ne.s32.totalorder %s113, %s115
      %p119 = scmp.eq.s32.totalorder %s16, 0
      %p120 = por %p118, %p119
      %p121 = scmp.ne.s32.totalorder %s113, %s115
      %p122 = scmp.eq.s32.totalorder %s21, 1
      %p123 = por %p121, %p122
      %p124 = scmp.ne.s32.totalorder %s115, %s116
      %p125 = scmp.eq.s32.totalorder %s21, 0
      %p126 = por %p124, %p125
      %p127 = scmp.ne.s32.totalorder %s115, %s116
      %p128 = scmp.eq.s32.totalorder %s22, 1
      %p129 = por %p127, %p128
      %p131 = scmp.ne.s32.totalorder %s116, %s130
      %p132 = scmp.eq.s32.totalorder %s22, 0
      %p133 = por %p131, %p132
      %s134 = ssub.s32 %s16, %s23
      %p135 = scmp.eq.s32.totalorder %s134, 0
      %s137 = sadd.s32 %s136, 1
      %s138 = scalar_select %p135, %s136, %s137
      %p141 = pneg %p135
      %p142 = scmp.eq.s32.totalorder %s16, 1
      %p143 = por %p141, %p142
      %p144 = scmp.ne.s32.totalorder %s136, %s139
      %p145 = scmp.eq.s32.totalorder %s16, 0
      %p146 = por %p144, %p145
      %p147 = scmp.ne.s32.totalorder %s136, %s139
      %p148 = scmp.eq.s32.totalorder %s21, 1
      %p149 = por %p147, %p148
      %p150 = scmp.ne.s32.totalorder %s139, %s140
      %p151 = scmp.eq.s32.totalorder %s21, 0
      %p152 = por %p150, %p151
      %p153 = scmp.ne.s32.totalorder %s139, %s140
      %p154 = scmp.eq.s32.totalorder %s22, 1
      %p155 = por %p153, %p154
      %p157 = scmp.ne.s32.totalorder %s140, %s156
      %p158 = scmp.eq.s32.totalorder %s22, 0
      %p159 = por %p157, %p158
      %p160 = scmp.le.s32.totalorder 1, %s16
      %p161 = scmp.lt.s32.totalorder %s16, 3
      %p162 = pnand %p160, %p161
      %p163 = pneg %p162
      // Predicated region
      $region9: #{tpu_custom_call.1} parent=5 // pred_check
        _
      $region10: #{tpu_custom_call.1} parent=5 // pred_check_branch
        %165 = sbr.rel (%p162) target = $region12
      $region11: #{tpu_custom_call.1} parent=5 // pred_region
        %s166 = ssub.s32 %s16, 1
        // Predicated region
        $region13: #{tpu_custom_call.1} parent=11 // pred_check
          %p167 = pneg %p63
        $region14: #{tpu_custom_call.1} parent=11 // pred_check_branch
          %169 = sbr.rel (%p167) target = $region16
        $region15: #{tpu_custom_call.1} parent=11 // pred_region
          %s171 = ssub.s32 4096, 4096
          %172 = vsyncadd [#allocation6], %s171
          %s173 = sshll.u32 [#allocation5], 4
          %s174 = int_to_ptr.vmem [resolvable:$true] %s173
          %179 = dma.hbm_to_vmem [thread:$0]  %s1, 4096, %s174, [#allocation6], 128, 128, 8
        $region16: #{tpu_custom_call.1} parent=11 // pred_fallthru
          _
        // Predicated region
        $region17: #{tpu_custom_call.1} parent=11 // pred_check
          %p180 = pneg %p84
        $region18: #{tpu_custom_call.1} parent=11 // pred_check_branch
          %182 = sbr.rel (%p180) target = $region20
        $region19: #{tpu_custom_call.1} parent=11 // pred_region
          _
        $region20: #{tpu_custom_call.1} parent=11 // pred_fallthru
          _
        // Predicated region
        $region21: #{tpu_custom_call.1} parent=11 // pred_check
          %p183 = pneg %p105
        $region22: #{tpu_custom_call.1} parent=11 // pred_check_branch
          %185 = sbr.rel (%p183) target = $region24
        $region23: #{tpu_custom_call.1} parent=11 // pred_region
          _
        $region24: #{tpu_custom_call.1} parent=11 // pred_fallthru
          _
        // Predicated region
        $region25: #{tpu_custom_call.1} parent=11 // pred_check
          %p186 = pneg %p126
        $region26: #{tpu_custom_call.1} parent=11 // pred_check_branch
          %188 = sbr.rel (%p186) target = $region28
        $region27: #{tpu_custom_call.1} parent=11 // pred_region
          _
        $region28: #{tpu_custom_call.1} parent=11 // pred_fallthru
          _
      $region12: #{tpu_custom_call.1} parent=5 // pred_fallthru
        _
      %p189 = scmp.lt.s32.totalorder %s16, 2
      // Predicated region
      $region29: #{tpu_custom_call.1} parent=5 // pred_check
        %p190 = pneg %p189
      $region30: #{tpu_custom_call.1} parent=5 // pred_check_branch
        %192 = sbr.rel (%p190) target = $region32
      $region31: #{tpu_custom_call.1} parent=5 // pred_region
        // Predicated region
        $region33: #{tpu_custom_call.1} parent=31 // pred_check
          %p193 = pneg %p36
        $region34: #{tpu_custom_call.1} parent=31 // pred_check_branch
          %195 = sbr.rel (%p193) target = $region36
        $region35: #{tpu_custom_call.1} parent=31 // pred_region
          %s196 = sand.u32 %s26, 1
          %s197 = scalar_lea.sflag [#allocation4], %s196
          %s198 = sand.u32 %s26, 1
          %s199 = smul.addr %s198, 16
          %s200 = scalar_lea.vmem [#allocation3], %s199
          %s202 = ssub.s32 256, 256
          %203 = vsyncadd %s197, %s202
          %s204 = smul.addr %s16, 2
          %s205 = smul.addr %s204, 128
          %s206 = scalar_lea.hbm %s0, %s205
          %s208 = sshll.u32 %s200, 4
          %s209 = int_to_ptr.vmem [resolvable:$true] %s208
          %211 = dma.hbm_to_vmem [thread:$0]  %s206, 256, %s209, %s197
        $region36: #{tpu_custom_call.1} parent=31 // pred_fallthru
          _
      $region32: #{tpu_custom_call.1} parent=5 // pred_fallthru
        _
      %p212 = scmp.le.s32.totalorder 1, %s16
      %p213 = scmp.lt.s32.totalorder %s16, 3
      %p214 = pnand %p212, %p213
      %p215 = pneg %p214
      // Predicated region
      $region37: #{tpu_custom_call.1} parent=5 // pred_check
        _
      $region38: #{tpu_custom_call.1} parent=5 // pred_check_branch
        %217 = sbr.rel (%p214) target = $region40
      $region39: #{tpu_custom_call.1} parent=5 // pred_region
        %s218 = ssub.s32 %s16, 1
        %s219 = sand.u32 %s29, 1
        %s220 = scalar_lea.sflag [#allocation4], %s219
        %s221 = sand.u32 %s29, 1
        %s222 = smul.addr %s221, 16
        %s223 = scalar_lea.vmem [#allocation3], %s222
        // Predicated region
        $region41: #{tpu_custom_call.1} parent=39 // pred_check
          %p224 = pneg %p42
        $region42: #{tpu_custom_call.1} parent=39 // pred_check_branch
          %226 = sbr.rel (%p224) target = $region44
        $region43: #{tpu_custom_call.1} parent=39 // pred_region
          %227 = dma.done %s220, 256
        $region44: #{tpu_custom_call.1} parent=39 // pred_fallthru
          _
        // Predicated region
        $region45: #{tpu_custom_call.1} parent=39 // pred_check
          %p228 = pneg %p63
        $region46: #{tpu_custom_call.1} parent=39 // pred_check_branch
          %230 = sbr.rel (%p228) target = $region48
        $region47: #{tpu_custom_call.1} parent=39 // pred_region
          %231 = dma.done [#allocation6], 4096
        $region48: #{tpu_custom_call.1} parent=39 // pred_fallthru
          _
        %s232 = sand.u32 %s29, 1
        %s233 = scalar_lea.sflag [#allocation4], %s232
        %s234 = sand.u32 %s29, 1
        %s235 = smul.addr %s234, 16
        %s236 = scalar_lea.vmem [#allocation3], %s235
        %p237 = pneg %p42
        %p238 = pneg %p39
        %p239 = pneg %p63
        %p240 = pneg %p60
        %p241 = pneg %p84
        %p242 = pneg %p81
        %p243 = pneg %p105
        %p244 = pneg %p102
        %p245 = pneg %p126
        %p246 = pneg %p123
        %p247 = pneg %p152
        %p248 = pneg %p149
        %p249 = scmp.lt.s32.totalorder %s21, 1
        %s250 = scalar_select %p249, %s21, 1
        %s251 = smul.addr %s250, 8
        %s252 = scalar_lea.vmem %s5, %s251
        %p253 = scmp.lt.s32.totalorder %s21, 1
        %s254 = scalar_select %p253, %s21, 1
        %s255 = smul.addr %s254, 8
        %s256 = scalar_lea.vmem %s5, %s255
        %v257 = vld [vmem:[%s223] sm:$0xff]
        %v258 = vld [vmem:[%s223 + $0x8] sm:$0xff]
        %v259 = vld [vmem:[#allocation5] sm:$0xff]
        %v260 = vld [vmem:[#allocation5 + $0x8] sm:$0xff]
        %v261 = vld [vmem:[#allocation5 + $0x10] sm:$0xff]
        %v262 = vld [vmem:[#allocation5 + $0x18] sm:$0xff]
        %v263 = vld [vmem:[#allocation5 + $0x20] sm:$0xff]
        %v264 = vld [vmem:[#allocation5 + $0x28] sm:$0xff]
        %v265 = vld [vmem:[#allocation5 + $0x30] sm:$0xff]
        %v266 = vld [vmem:[#allocation5 + $0x38] sm:$0xff]
        %v267 = vld [vmem:[#allocation5 + $0x40] sm:$0xff]
        %v268 = vld [vmem:[#allocation5 + $0x48] sm:$0xff]
        %v269 = vld [vmem:[#allocation5 + $0x50] sm:$0xff]
        %v270 = vld [vmem:[#allocation5 + $0x58] sm:$0xff]
        %v271 = vld [vmem:[#allocation5 + $0x60] sm:$0xff]
        %v272 = vld [vmem:[#allocation5 + $0x68] sm:$0xff]
        %v273 = vld [vmem:[#allocation5 + $0x70] sm:$0xff]
        %v274 = vld [vmem:[#allocation5 + $0x78] sm:$0xff]
        %v275 = vld [vmem:[#allocation5 + $0x80] sm:$0xff]
        %v276 = vld [vmem:[#allocation5 + $0x88] sm:$0xff]
        %v277 = vld [vmem:[#allocation5 + $0x90] sm:$0xff]
        %v278 = vld [vmem:[#allocation5 + $0x98] sm:$0xff]
        %v279 = vld [vmem:[#allocation5 + $0xa0] sm:$0xff]
        %v280 = vld [vmem:[#allocation5 + $0xa8] sm:$0xff]
        %v281 = vld [vmem:[#allocation5 + $0xb0] sm:$0xff]
        %v282 = vld [vmem:[#allocation5 + $0xb8] sm:$0xff]
        %v283 = vld [vmem:[#allocation5 + $0xc0] sm:$0xff]
        %v284 = vld [vmem:[#allocation5 + $0xc8] sm:$0xff]
        %v285 = vld [vmem:[#allocation5 + $0xd0] sm:$0xff]
        %v286 = vld [vmem:[#allocation5 + $0xd8] sm:$0xff]
        %v287 = vld [vmem:[#allocation5 + $0xe0] sm:$0xff]
        %v288 = vld [vmem:[#allocation5 + $0xe8] sm:$0xff]
        %v289 = vld [vmem:[#allocation5 + $0xf0] sm:$0xff]
        %v290 = vld [vmem:[#allocation5 + $0xf8] sm:$0xff]
        %v291 = vld [vmem:[%s2] sm:$0x1]
        %v293 = vlaneseq
        %v294 = vshrl.u32 %v293, 7
        %v295 = vsub.s32 0, %v294
        %v296 = vrot.slane %v291, %v295
        %298 = vmatprep.subr.mxu0 0.0
        %299 = vmatpush1.msra.mxu0 %v259
        %300 = vmatprep.subr.mxu0 0.0
        %301 = vmatpush1.msra.mxu0 %v260
        %302 = vmatprep.subr.mxu0 0.0
        %303 = vmatpush1.msra.mxu0 %v261
        %304 = vmatprep.subr.mxu0 0.0
        %305 = vmatpush1.msra.mxu0 %v262
        %306 = vmatprep.subr.mxu0 0.0
        %307 = vmatpush1.msra.mxu0 %v263
        %308 = vmatprep.subr.mxu0 0.0
        %309 = vmatpush1.msra.mxu0 %v264
        %310 = vmatprep.subr.mxu0 0.0
        %311 = vmatpush1.msra.mxu0 %v265
        %312 = vmatprep.subr.mxu0 0.0
        %313 = vmatpush1.msra.mxu0 %v266
        %314 = vmatprep.subr.mxu0 0.0
        %315 = vmatpush1.msra.mxu0 %v267
        %316 = vmatprep.subr.mxu0 0.0
        %317 = vmatpush1.msra.mxu0 %v268
        %318 = vmatprep.subr.mxu0 0.0
        %319 = vmatpush1.msra.mxu0 %v269
        %320 = vmatprep.subr.mxu0 0.0
        %321 = vmatpush1.msra.mxu0 %v270
        %322 = vmatprep.subr.mxu0 0.0
        %323 = vmatpush1.msra.mxu0 %v271
        %324 = vmatprep.subr.mxu0 0.0
        %325 = vmatpush1.msra.mxu0 %v272
        %326 = vmatprep.subr.mxu0 0.0
        %327 = vmatpush1.msra.mxu0 %v273
        %328 = vmatprep.subr.mxu0 0.0
        %329 = vmatpush1.msra.mxu0 %v274
        %330 = vmatprep.subr.mxu0 0.0
        %331 = vmatpush1.msra.mxu0 %v275
        %332 = vmatprep.subr.mxu0 0.0
        %333 = vmatpush1.msra.mxu0 %v276
        %334 = vmatprep.subr.mxu0 0.0
        %335 = vmatpush1.msra.mxu0 %v277
        %336 = vmatprep.subr.mxu0 0.0
        %337 = vmatpush1.msra.mxu0 %v278
        %338 = vmatprep.subr.mxu0 0.0
        %339 = vmatpush1.msra.mxu0 %v279
        %340 = vmatprep.subr.mxu0 0.0
        %341 = vmatpush1.msra.mxu0 %v280
        %342 = vmatprep.subr.mxu0 0.0
        %343 = vmatpush1.msra.mxu0 %v281
        %344 = vmatprep.subr.mxu0 0.0
        %345 = vmatpush1.msra.mxu0 %v282
        %346 = vmatprep.subr.mxu0 0.0
        %347 = vmatpush1.msra.mxu0 %v283
        %348 = vmatprep.subr.mxu0 0.0
        %349 = vmatpush1.msra.mxu0 %v284
        %350 = vmatprep.subr.mxu0 0.0
        %351 = vmatpush1.msra.mxu0 %v285
        %352 = vmatprep.subr.mxu0 0.0
        %353 = vmatpush1.msra.mxu0 %v286
        %354 = vmatprep.subr.mxu0 0.0
        %355 = vmatpush1.msra.mxu0 %v287
        %356 = vmatprep.subr.mxu0 0.0
        %357 = vmatpush1.msra.mxu0 %v288
        %358 = vmatprep.subr.mxu0 0.0
        %359 = vmatpush1.msra.mxu0 %v289
        %360 = vmatprep.subr.mxu0 0.0
        %361 = vmatpush1.msra.mxu0 %v290
        %362 = vmatprep.mubr.f32.mxu0 %v258
        %363 = vmatmul.mubr.f32.gmra.mrb[0].mxu0 %v257
        %v364 = vpop.f32.mrb[0].mxu0
        %v365 = vadd.f32 %v296, %v364
        %v366 = vpop.f32.mrb[0].mxu0
        %367 = vdwg.mxu0
        %vm368 = vcmp.ge.f32.partialorder %v365, 0.0
        %v369 = vmul.f32 %v365, 0.2
        %v370 = vsel %vm368, %v365, %v369
        %v371 = vld [vmem:[%s3] sm:$0x1]
        %v373 = vlaneseq
        %v374 = vshrl.u32 %v373, 7
        %v375 = vsub.s32 0, %v374
        %v376 = vrot.slane %v371, %v375
        %v378 = vmul.f32 %v370, %v376
        %379 = vadd.xlane.f32.xlu0 %v378
        %v380 = vpop.xlane.xlu0 %379
        %s381 = sld [smem:[#allocation2]]
        %v382 = vstv %s381
        %v383 = vadd.f32 %v380, %v382
        %v384 = vxor.u32 %v383, 2147483648
        %v385 = vmul.f32 %v384, 1.442695
        %v386 = vpow.pop %v385
        %v387 = vadd.f32 %v386, 1.0
        %v388 = vrcp.pop %v387
        %v389 = vmul.f32 1.0, %v388
        %vm390 = vcmask 7168
        %391 = vst.msk [vmem:[%s256] sm:$0xff] %vm390, %v389
        %p392 = scmp.lt.s32.totalorder %s21, 1
        %s393 = scalar_select %p392, %s21, 1
        %s394 = smul.addr %s393, 8
        %s395 = scalar_lea.vmem %s5, %s394
        // Predicated region
        $region49: #{tpu_custom_call.1} parent=39 // pred_check
          %p396 = pneg %p149
        $region50: #{tpu_custom_call.1} parent=39 // pred_check_branch
          %398 = sbr.rel (%p396) target = $region52
        $region51: #{tpu_custom_call.1} parent=39 // pred_region
          _
        $region52: #{tpu_custom_call.1} parent=39 // pred_fallthru
          _
      $region40: #{tpu_custom_call.1} parent=5 // pred_fallthru
        _
      %p399 = scmp.le.s32.totalorder 2, %s16
      // Predicated region
      $region53: #{tpu_custom_call.1} parent=5 // pred_check
        %p400 = pneg %p399
      $region54: #{tpu_custom_call.1} parent=5 // pred_check_branch
        %402 = sbr.rel (%p400) target = $region56
      $region55: #{tpu_custom_call.1} parent=5 // pred_region
        %s403 = ssub.s32 %s16, 2
        // Predicated region
        $region57: #{tpu_custom_call.1} parent=55 // pred_check
          %p404 = pneg %p155
        $region58: #{tpu_custom_call.1} parent=55 // pred_check_branch
          %406 = sbr.rel (%p404) target = $region60
        $region59: #{tpu_custom_call.1} parent=55 // pred_region
          %p407 = scmp.lt.s32.totalorder %s22, 1
          %s408 = scalar_select %p407, %s22, 1
          %s409 = smul.addr %s408, 8
          %s410 = scalar_lea.vmem %s5, %s409
        $region60: #{tpu_custom_call.1} parent=55 // pred_fallthru
          _
      $region56: #{tpu_custom_call.1} parent=5 // pred_fallthru
        _
    $region6: #{tpu_custom_call.1} parent=1 // loop_footer
      %s20 = sadd.s32 1, %s16
    $region7: #{tpu_custom_call.1} parent=1 // loop_footer_branch
      %15 = sbr.rel target = $region3
    $region8: #{tpu_custom_call.1} parent=1 // loop_exit
      _
    %411 = vsyncpa [#allocation4], 1
    %s412 = scalar_lea.sflag [#allocation4], 1
    %413 = vsyncpa %s412, 1
    %414 = vsyncpa [#allocation6], 1

</llo_original>
